<compile_context>
chip_gen: v6e
topology: v6e:2x2x1
jax: 0.10.0
libtpu: 0.0.40
codegen_flags: <defaults>
</compile_context>

<pallas_src>
import functools

import jax
import jax.numpy as jnp
from jax.experimental import pallas as pl
from jax.experimental.pallas import tpu as pltpu

_LANE = 128


def _focal_loss_kernel(x_ref, y_ref, a_ref, out_ref, acc_ref, *,
                       gamma, scale, single_step):
    # x_ref  : (bn, C, Ts) logits in native dtype (cast to f32 after load)
    # y_ref  : (bn, 1, Ts) int32 targets (-1 marks padded lanes / rows)
    # a_ref  : (1,  C, 1)  f32 per-class alpha (ones when alpha is None)
    # out_ref: (1, 1)      f32 final scalar loss
    # acc_ref: (1, Ts)     f32 running per-lane partial sums (multi-step grids)
    x = x_ref[...].astype(jnp.float32)
    y = y_ref[...]
    a = a_ref[...]
    bn, C, Ts = x.shape

    # Numerically stable log-softmax pieces over the class axis (axis=1).
    m = jnp.max(x, axis=1, keepdims=True)                        # (bn, 1, Ts)
    z = x - m
    ez = jnp.exp(z)                                              # (bn, C, Ts)
    sum_ez = jnp.sum(ez, axis=1, keepdims=True)                  # (bn, 1, Ts)
    lse = jnp.log(sum_ez)

    # Target select via masked sums (no gather, no f32 one-hot temporaries).
    cls = jax.lax.broadcasted_iota(jnp.int32, (1, C, 1), 1)
    mask = cls == y                                              # (bn, C, Ts)
    z_t = jnp.sum(jnp.where(mask, z, 0.0), axis=1, keepdims=True)
    ez_t = jnp.sum(jnp.where(mask, ez, 0.0), axis=1, keepdims=True)
    a_t = jnp.sum(jnp.where(mask, a, 0.0), axis=1, keepdims=True)

    logpt = z_t - lse                                            # exact log p_t
    # Reuse exp(z) from the LSE instead of a second exp: p_t = e^{z_t} / sum e^z.
    pt = ez_t * pl.reciprocal(sum_ez, approx=True)
    logpt = logpt * a_t            # alpha[target]; 0 on padded lanes -> 0 loss

    one_minus = jnp.maximum(1.0 - pt, 0.0)     # clamp fp noise (pt ~ 1 + eps)
    if gamma == 0:                             # static Python branches
        loss = -logpt
    else:
        if float(gamma).is_integer() and gamma > 0:
            focal = one_minus
            for _ in range(int(gamma) - 1):    # unrolled small-int power
                focal = focal * one_minus
        else:
            focal = one_minus ** gamma
        loss = -(focal * logpt)                # (bn, 1, Ts)

    part = jnp.sum(loss, axis=0)               # (1, Ts) lane-parallel partial

    if single_step:
        # Single reduction step: skip the scratch round-trip entirely.
        out_ref[...] = jnp.sum(part, axis=-1, keepdims=True) * scale
    else:
        n_i, s_i = pl.program_id(0), pl.program_id(1)

        @pl.when((n_i == 0) & (s_i == 0))
        def _init():
            acc_ref[...] = jnp.zeros_like(acc_ref)

        acc_ref[...] += part

        @pl.when((n_i == pl.num_programs(0) - 1)
                 & (s_i == pl.num_programs(1) - 1))
        def _finalize():
            out_ref[...] = jnp.sum(acc_ref[...], axis=-1, keepdims=True) * scale


def focal_loss(inputs, target, *, gamma=0.0, alpha=None, size_average=True,
               block_bytes_limit=2 * 1024 * 1024):
    """JAX/Pallas equivalent of FocalLoss.forward(input, target)."""
    x = jnp.asarray(inputs)                     # keep native dtype (no f32 copy in HBM)
    t = jnp.asarray(target, jnp.int32)
    # TODO(synk): targets could be shipped as int16/uint8 (C <= 255) to shave HBM traffic.

    if x.ndim > 2:
        Nr, C = x.shape[0], x.shape[1]
        x3 = x.reshape(Nr, C, -1)               # contiguous reshape, no transpose
        S = x3.shape[2]
        y3 = t.reshape(Nr, 1, S)
    else:
        # Classification shape (N, C): put the N samples on the 128-lane axis.
        S, C = x.shape
        Nr = 1
        x3 = jnp.swapaxes(x, 0, 1).reshape(1, C, S)
        y3 = t.reshape(1, 1, S)
    n_samples = Nr * S

    if alpha is None:
        a = jnp.ones((1, C, 1), jnp.float32)
    else:
        a = jnp.asarray(alpha, jnp.float32).reshape(1, C, 1)

    # Tile selection: (bn, C, Ts) blocks, Ts a multiple of 128, ~2 MiB per
    # logits buffer.  Double-buffered inputs + f32 temporaries stay well inside
    # the 32 MiB scoped-VMEM budget on every generation (v5e/v6e/v7x).
    itemsize = x3.dtype.itemsize
    ts_cap = max(_LANE,
                 (block_bytes_limit // max(1, C * itemsize)) // _LANE * _LANE)
    s_up = pl.cdiv(S, _LANE) * _LANE
    num_s = pl.cdiv(s_up, ts_cap)
    Ts = pl.cdiv(s_up, num_s * _LANE) * _LANE
    s_pad = num_s * Ts

    if num_s == 1:       # small spatial extent: pack several batch rows per step
        bn = max(1, min(Nr, block_bytes_limit // max(1, C * s_pad * itemsize)))
    else:
        bn = 1
    nr_pad = pl.cdiv(Nr, bn) * bn

    if s_pad != S or nr_pad != Nr:
        # Padded logits are 0 and padded targets are -1: the all-false one-hot
        # gives alpha_t == 0, so padded positions contribute exactly 0 loss.
        x3 = jnp.pad(x3, ((0, nr_pad - Nr), (0, 0), (0, s_pad - S)))
        y3 = jnp.pad(y3, ((0, nr_pad - Nr), (0, 0), (0, s_pad - S)),
                     constant_values=-1)

    grid = (nr_pad // bn, num_s)
    single_step = grid == (1, 1)
    scale = (1.0 / float(n_samples)) if size_average else 1.0

    kernel = functools.partial(_focal_loss_kernel, gamma=gamma, scale=scale,
                               single_step=single_step)

    # TODO(synk): for v7x megacore, make the row axis "parallel" with per-row
    # partial-sum outputs reduced in the wrapper to engage both TensorCores.
    out = pl.pallas_call(
        kernel,
        out_shape=jax.ShapeDtypeStruct((1, 1), jnp.float32),
        grid_spec=pltpu.PrefetchScalarGridSpec(
            num_scalar_prefetch=0,
            grid=grid,
            in_specs=[
                pl.BlockSpec((bn, C, Ts), lambda n, s: (n, 0, s)),  # logits
                pl.BlockSpec((bn, 1, Ts), lambda n, s: (n, 0, s)),  # targets
                pl.BlockSpec((1, C, 1), lambda n, s: (0, 0, 0)),    # alpha (resident)
            ],
            out_specs=pl.BlockSpec((1, 1), lambda n, s: (0, 0)),
            scratch_shapes=[pltpu.VMEM((1, Ts), jnp.float32)],
        ),
        compiler_params=pltpu.CompilerParams(
            dimension_semantics=("arbitrary", "arbitrary"),
            vmem_limit_bytes=32 * 1024 * 1024,
        ),
    )(x3, y3, a)
    return out[0, 0]


def _reference_focal_loss(inputs, target, gamma, alpha, size_average):
    """Pure-JAX mirror of the PyTorch module (for validation)."""
    x = jnp.asarray(inputs, jnp.float32)
    if x.ndim > 2:
        N, C = x.shape[0], x.shape[1]
        x = x.reshape(N, C, -1)
        x = jnp.transpose(x, (0, 2, 1)).reshape(-1, C)
    t = jnp.asarray(target, jnp.int32).reshape(-1)
    logp = jax.nn.log_softmax(x, axis=-1)
    logpt = jnp.take_along_axis(logp, t[:, None], axis=-1)[:, 0]
    pt = jnp.exp(logpt)
    if alpha is not None:
        at = jnp.asarray(alpha, jnp.float32)[t]
        logpt = logpt * at
    loss = -((1.0 - pt) ** gamma) * logpt
    return loss.mean() if size_average else loss.sum()


if __name__ == "__main__":
    # Segmentation-like shapes implied by the forward's view/transpose path:
    # input [N, C, H, W], target [N, H, W].
    N, C, H, W = 2, 4, 16, 16
    key = jax.random.PRNGKey(0)
    k_x, k_t, k_x2, k_t2, k_x3, k_t3 = jax.random.split(key, 6)
    logits = jax.random.normal(k_x, (N, C, H, W), dtype=jnp.float32)
    target = jax.random.randint(k_t, (N, H, W), 0, C, dtype=jnp.int32)
    alpha = jnp.array([0.25, 0.75, 1.0, 0.5], dtype=jnp.float32)

    # NOTE on tolerances: pt goes through the EUP approximate reciprocal
    # (pl.reciprocal(..., approx=True)), so gamma>0 cases are compared against
    # the exact reference with a loose tolerance; the gamma=0 path and the
    # tiled-vs-untiled kernel consistency are checked tight.

    # 1) gamma=2 with per-class alpha (full focal-loss path, single-step grid).
    loss = focal_loss(logits, target, gamma=2.0, alpha=alpha, size_average=True)
    jax.block_until_ready(loss)
    ref = _reference_focal_loss(logits, target, 2.0, alpha, True)
    assert jnp.allclose(loss, ref, rtol=5e-2, atol=1e-3), (loss, ref)

    # 2) gamma=0, no alpha (degenerates to mean NLL) — exact path, tight check.
    loss0 = focal_loss(logits, target, gamma=0.0, alpha=None, size_average=True)
    jax.block_until_ready(loss0)
    ref0 = _reference_focal_loss(logits, target, 0.0, None, True)
    assert jnp.allclose(loss0, ref0, rtol=1e-5, atol=1e-6), (loss0, ref0)

    # 3) Force the multi-step tiled reduction path (2x2 grid of (1, C, 128)
    #    blocks) and check it matches the single-step kernel tightly.
    loss_t = focal_loss(logits, target, gamma=2.0, alpha=alpha,
                        size_average=True, block_bytes_limit=2048)
    jax.block_until_ready(loss_t)
    assert jnp.allclose(loss_t, loss, rtol=1e-5, atol=1e-6), (loss_t, loss)
    assert jnp.allclose(loss_t, ref, rtol=5e-2, atol=1e-3), (loss_t, ref)

    # 4) 2-D classification input -> lane-dense (1, C, N) layout + lane padding.
    logits2d = jax.random.normal(k_x2, (16, C), dtype=jnp.float32)
    target2d = jax.random.randint(k_t2, (16,), 0, C, dtype=jnp.int32)
    loss2d = focal_loss(logits2d, target2d, gamma=2.0, alpha=None,
                        size_average=False)
    jax.block_until_ready(loss2d)
    ref2d = _reference_focal_loss(logits2d, target2d, 2.0, None, False)
    assert jnp.allclose(loss2d, ref2d, rtol=5e-2, atol=1e-3), (loss2d, ref2d)

    # 5) Odd spatial size (padding path), sum reduction, gamma=1.
    logits_o = jax.random.normal(k_x3, (2, C, 10, 10), dtype=jnp.float32)
    target_o = jax.random.randint(k_t3, (2, 10, 10), 0, C, dtype=jnp.int32)
    loss_o = focal_loss(logits_o, target_o, gamma=1.0, alpha=alpha,
                        size_average=False)
    jax.block_until_ready(loss_o)
    ref_o = _reference_focal_loss(logits_o, target_o, 1.0, alpha, False)
    assert jnp.allclose(loss_o, ref_o, rtol=5e-2, atol=1e-3), (loss_o, ref_o)

    print("KERNEL_OK")
</pallas_src>

<mosaic_0001>
module attributes {stable_mosaic.version = 11 : i64} {
  func.func @_focal_loss_kernel(%arg0: i32, %arg1: i32, %arg2: memref<2x4x256xf32, #tpu.memory_space<vmem>>, %arg3: memref<2x1x256xi32, #tpu.memory_space<vmem>>, %arg4: memref<1x4x1xf32, #tpu.memory_space<vmem>>, %arg5: memref<1x1xf32, #tpu.memory_space<vmem>>, %arg6: memref<1x256xf32, #tpu.memory_space<vmem>>) attributes {dimension_semantics = [#tpu.dimension_semantics<arbitrary>, #tpu.dimension_semantics<arbitrary>], iteration_bounds = array<i64: 1, 1>, scalar_prefetch = 0 : i64, scratch_operands = 1 : i64, tpu.core_type = #tpu.core_type<tc>, window_params = [{transform_indices = @transform_0, window_bounds = array<i64: 2, 4, 256>}, {transform_indices = @transform_1, window_bounds = array<i64: 2, 1, 256>}, {pipeline_mode = #tpu.pipeline_mode<synchronous>, transform_indices = @transform_2, window_bounds = array<i64: 1, 4, 1>}, {pipeline_mode = #tpu.pipeline_mode<synchronous>, transform_indices = @transform_3, window_bounds = array<i64: 1, 1>}]} {
    %c0 = arith.constant 0 : index
    %c0_0 = arith.constant 0 : index
    %c0_1 = arith.constant 0 : index
    %0 = vector.load %arg2[%c0, %c0_0, %c0_1] : memref<2x4x256xf32, #tpu.memory_space<vmem>>, vector<2x4x256xf32>
    %c0_2 = arith.constant 0 : index
    %c0_3 = arith.constant 0 : index
    %c0_4 = arith.constant 0 : index
    %1 = vector.load %arg3[%c0_2, %c0_3, %c0_4] : memref<2x1x256xi32, #tpu.memory_space<vmem>>, vector<2x1x256xi32>
    %c0_5 = arith.constant 0 : index
    %c0_6 = arith.constant 0 : index
    %c0_7 = arith.constant 0 : index
    %2 = vector.load %arg4[%c0_5, %c0_6, %c0_7] : memref<1x4x1xf32, #tpu.memory_space<vmem>>, vector<1x4x1xf32>
    %cst = arith.constant dense<0xFF800000> : vector<2x256xf32>
    %3 = vector.multi_reduction <maximumf>, %0, %cst [1] : vector<2x4x256xf32> to vector<2x256xf32>
    %4 = vector.shape_cast %3 : vector<2x256xf32> to vector<2x1x256xf32>
    %5 = vector.broadcast %4 : vector<2x1x256xf32> to vector<2x4x256xf32>
    %6 = arith.subf %0, %5 : vector<2x4x256xf32>
    %7 = math.exp %6 : vector<2x4x256xf32>
    %cst_8 = arith.constant dense<0.000000e+00> : vector<2x256xf32>
    %8 = vector.multi_reduction <add>, %7, %cst_8 [1] : vector<2x4x256xf32> to vector<2x256xf32>
    %9 = vector.shape_cast %8 : vector<2x256xf32> to vector<2x1x256xf32>
    %10 = math.log %9 : vector<2x1x256xf32>
    %11 = tpu.iota {dimensions = array<i32: 1>} : vector<1x4x1xi32>
    %12 = vector.broadcast %11 : vector<1x4x1xi32> to vector<2x4x256xi32>
    %13 = vector.broadcast %1 : vector<2x1x256xi32> to vector<2x4x256xi32>
    %14 = arith.cmpi eq, %12, %13 : vector<2x4x256xi32>
    %cst_9 = arith.constant 0.000000e+00 : f32
    %15 = vector.broadcast %cst_9 : f32 to vector<2x4x256xf32>
    %16 = arith.select %14, %6, %15 : vector<2x4x256xi1>, vector<2x4x256xf32>
    %cst_10 = arith.constant dense<0.000000e+00> : vector<2x256xf32>
    %17 = vector.multi_reduction <add>, %16, %cst_10 [1] : vector<2x4x256xf32> to vector<2x256xf32>
    %18 = vector.shape_cast %17 : vector<2x256xf32> to vector<2x1x256xf32>
    %cst_11 = arith.constant 0.000000e+00 : f32
    %19 = vector.broadcast %cst_11 : f32 to vector<2x4x256xf32>
    %20 = arith.select %14, %7, %19 : vector<2x4x256xi1>, vector<2x4x256xf32>
    %cst_12 = arith.constant dense<0.000000e+00> : vector<2x256xf32>
    %21 = vector.multi_reduction <add>, %20, %cst_12 [1] : vector<2x4x256xf32> to vector<2x256xf32>
    %22 = vector.shape_cast %21 : vector<2x256xf32> to vector<2x1x256xf32>
    %cst_13 = arith.constant 0.000000e+00 : f32
    %23 = vector.shape_cast %2 : vector<1x4x1xf32> to vector<1x4x1xf32>
    %24 = vector.broadcast %23 : vector<1x4x1xf32> to vector<2x4x256xf32>
    %25 = vector.broadcast %cst_13 : f32 to vector<2x4x256xf32>
    %26 = arith.select %14, %24, %25 : vector<2x4x256xi1>, vector<2x4x256xf32>
    %cst_14 = arith.constant dense<0.000000e+00> : vector<2x256xf32>
    %27 = vector.multi_reduction <add>, %26, %cst_14 [1] : vector<2x4x256xf32> to vector<2x256xf32>
    %28 = vector.shape_cast %27 : vector<2x256xf32> to vector<2x1x256xf32>
    %29 = arith.subf %18, %10 : vector<2x1x256xf32>
    %30 = tpu.reciprocal %9 {approx = true} : vector<2x1x256xf32> -> vector<2x1x256xf32>
    %31 = arith.mulf %22, %30 : vector<2x1x256xf32>
    %32 = arith.mulf %29, %28 : vector<2x1x256xf32>
    %cst_15 = arith.constant 1.000000e+00 : f32
    %33 = vector.broadcast %cst_15 : f32 to vector<2x1x256xf32>
    %34 = arith.subf %33, %31 : vector<2x1x256xf32>
    %cst_16 = arith.constant 0.000000e+00 : f32
    %35 = vector.broadcast %cst_16 : f32 to vector<2x1x256xf32>
    %36 = arith.maximumf %34, %35 : vector<2x1x256xf32>
    %37 = arith.mulf %36, %36 : vector<2x1x256xf32>
    %38 = arith.mulf %37, %32 : vector<2x1x256xf32>
    %cst_17 = arith.constant 0.000000e+00 : f32
    %39 = vector.broadcast %cst_17 : f32 to vector<2x1x256xf32>
    %40 = arith.subf %39, %38 : vector<2x1x256xf32>
    %cst_18 = arith.constant dense<0.000000e+00> : vector<1x256xf32>
    %41 = vector.multi_reduction <add>, %40, %cst_18 [0] : vector<2x1x256xf32> to vector<1x256xf32>
    %cst_19 = arith.constant dense<0.000000e+00> : vector<1xf32>
    %42 = vector.multi_reduction <add>, %41, %cst_19 [1] : vector<1x256xf32> to vector<1xf32>
    %43 = vector.shape_cast %42 : vector<1xf32> to vector<1x1xf32>
    %cst_20 = arith.constant 0.001953125 : f32
    %44 = vector.broadcast %cst_20 : f32 to vector<1x1xf32>
    %45 = arith.mulf %43, %44 : vector<1x1xf32>
    %c0_21 = arith.constant 0 : index
    %c0_22 = arith.constant 0 : index
    %46 = vector.load %arg5[%c0_21, %c0_22] : memref<1x1xf32, #tpu.memory_space<vmem>>, vector<1x1xf32>
    tpu.vector_store %arg5[%c0_21, %c0_22], %45 {strides = array<i32>} : memref<1x1xf32, #tpu.memory_space<vmem>>, vector<1x1xf32>,
    return
  }
  func.func @transform_0(%arg0: i32, %arg1: i32) -> (i32, i32, i32) {
    %c0_i32 = arith.constant 0 : i32
    %c0_i32_0 = arith.constant 0 : i32
    return %arg0, %c0_i32, %arg1 : i32, i32, i32
  }
  func.func @transform_1(%arg0: i32, %arg1: i32) -> (i32, i32, i32) {
    %c0_i32 = arith.constant 0 : i32
    %c0_i32_0 = arith.constant 0 : i32
    return %arg0, %c0_i32, %arg1 : i32, i32, i32
  }
  func.func @transform_2(%arg0: i32, %arg1: i32) -> (i32, i32, i32) {
    %c0_i32 = arith.constant 0 : i32
    %c0_i32_0 = arith.constant 0 : i32
    %c0_i32_1 = arith.constant 0 : i32
    %c0_i32_2 = arith.constant 0 : i32
    return %c0_i32, %c0_i32_0, %c0_i32_1 : i32, i32, i32
  }
  func.func @transform_3(%arg0: i32, %arg1: i32) -> (i32, i32) {
    %c0_i32 = arith.constant 0 : i32
    %c0_i32_0 = arith.constant 0 : i32
    %c0_i32_1 = arith.constant 0 : i32
    return %c0_i32, %c0_i32_0 : i32, i32
  }
}

</mosaic_0001>

<llo_original>
// kernel: tpu_custom_call.1
$region0: #{tpu_custom_call.1}
  #allocation0 [shape = 'u32[]', space=smem, size = 0x4, offset = 0x4, fixed_abs, tag = 'smem constant byte address 0x4 - core index']
  #allocation1 [shape = 'u32[144,128]{1,0:T(1,128)}', space=vmem, size = 0x12000, scoped, tag = 'internal scratch']
  #allocation2 [shape = 'f32[1,256]{1,0:T(1,128)}', space=vmem, size = 0x400, scoped, tag = 'scratch operand']
  %s0 = inlined_call_operand.hbm [shape: f32[2,4,256], index: 0, kind: input, shape index: {}]
  %s1 = inlined_call_operand.vmem [shape: s32[2,1,256], index: 1, kind: input, shape index: {}]
  %s2 = inlined_call_operand.vmem [shape: f32[1,4,1], index: 2, kind: input, shape index: {}]
  %s3 = inlined_call_operand.hbm [shape: f32[1,1], index: 3, kind: output, shape index: {}]
  %s4 = sld [smem:[#allocation0]]
  $region26: #{tpu_custom_call.1} parent=0
    _
  %s6 = ssub.s32 1, %s4
  %s7 = scalar_select 0, %s6, %s4
  $region1: #{tpu_custom_call.1} parent=0
    #allocation3 [shape = 'u8[8192]{0}', space=vmem, size = 0x2000, scoped, tag = 'input window, operand 0, single buffered']
    #allocation4 [shape = 's32[1]{0}', space=sflag, size = 0x4, scoped, tag = 'scoped memory for tpu_custom_call.1']
    #allocation5 [shape = 's32[1]{0}', space=sflag, size = 0x4, scoped, tag = 'scoped memory for tpu_custom_call.1']
    #allocation6 [shape = 'u8[512]{0}', space=vmem, size = 0x400, scoped, tag = 'output window, operand 0, single buffered']
    %8 = vsyncpa [#allocation4], 0
    %9 = vsyncpa [#allocation5], 0
    // Predicated region
    $region2: #{tpu_custom_call.1} parent=1 // pred_check
      _
    $region3: #{tpu_custom_call.1} parent=1 // pred_check_branch
      %11 = sbr.rel (0) target = $region5
    $region4: #{tpu_custom_call.1} parent=1 // pred_region
      %s13 = ssub.s32 256, 256
      %14 = vsyncadd [#allocation4], %s13
      %s15 = sshll.u32 [#allocation3], 4
      %s16 = int_to_ptr.vmem [resolvable:$true] %s15
      %21 = dma.hbm_to_vmem [thread:$0]  %s0, 256, %s16, [#allocation4], 128, 128, 8
    $region5: #{tpu_custom_call.1} parent=1 // pred_fallthru
      _
    // Predicated region
    $region6: #{tpu_custom_call.1} parent=1 // pred_check
      _
    $region7: #{tpu_custom_call.1} parent=1 // pred_check_branch
      %23 = sbr.rel (0) target = $region9
    $region8: #{tpu_custom_call.1} parent=1 // pred_region
      _
    $region9: #{tpu_custom_call.1} parent=1 // pred_fallthru
      _
    // Predicated region
    $region10: #{tpu_custom_call.1} parent=1 // pred_check
      _
    $region11: #{tpu_custom_call.1} parent=1 // pred_check_branch
      %25 = sbr.rel (0) target = $region13
    $region12: #{tpu_custom_call.1} parent=1 // pred_region
      _
    $region13: #{tpu_custom_call.1} parent=1 // pred_fallthru
      _
    // Predicated region
    $region14: #{tpu_custom_call.1} parent=1 // pred_check
      _
    $region15: #{tpu_custom_call.1} parent=1 // pred_check_branch
      %27 = sbr.rel (0) target = $region17
    $region16: #{tpu_custom_call.1} parent=1 // pred_region
      %28 = dma.done [#allocation4], 256
    $region17: #{tpu_custom_call.1} parent=1 // pred_fallthru
      _
    %v29 = vld [vmem:[#allocation3] sm:$0xff]
    %v30 = vld [vmem:[#allocation3 + $0x8] sm:$0xff]
    %v31 = vld [vmem:[%s1] sm:$0x3]
    %v32 = vld [vmem:[%s1 + $0x2] sm:$0x3]
    %v33 = vld [vmem:[%s2] sm:$0xf]
    %v36 = vcombine.high %v29, %v29
    %v37 = vcombine.high %v30, %v30
    %vm40 = vcmask 1043456
    %v41 = vsel %vm40, %v29, -inf
    %v42 = vrot.slane %v41, 4
    %v43 = vmax.f32 %v41, %v42
    %v44 = vrot.slane %v43, 2
    %v45 = vmax.f32 %v43, %v44
    %v46 = vrot.slane %v45, 1
    %v47 = vmax.f32 %v45, %v46
    %v48 = vsel %vm40, %v36, -inf
    %v49 = vrot.slane %v48, 4
    %v50 = vmax.f32 %v48, %v49
    %v51 = vrot.slane %v50, 2
    %v52 = vmax.f32 %v50, %v51
    %v53 = vrot.slane %v52, 1
    %v54 = vmax.f32 %v52, %v53
    %v55 = vsel %vm40, %v30, -inf
    %v56 = vrot.slane %v55, 4
    %v57 = vmax.f32 %v55, %v56
    %v58 = vrot.slane %v57, 2
    %v59 = vmax.f32 %v57, %v58
    %v60 = vrot.slane %v59, 1
    %v61 = vmax.f32 %v59, %v60
    %v62 = vsel %vm40, %v37, -inf
    %v63 = vrot.slane %v62, 4
    %v64 = vmax.f32 %v62, %v63
    %v65 = vrot.slane %v64, 2
    %v66 = vmax.f32 %v64, %v65
    %v67 = vrot.slane %v66, 1
    %v68 = vmax.f32 %v66, %v67
    %v73 = vcombine.low %v47, %v54
    %v74 = vcombine.low %v61, %v68
    %v77 = vsub.f32 %v29, %v73
    %v78 = vsub.f32 %v30, %v74
    %v79 = vmul.f32 %v77, 1.442695
    %v80 = vpow.pop %v79
    %v81 = vmul.f32 %v78, 1.442695
    %v82 = vpow.pop %v81
    %v85 = vcombine.high %v80, %v80
    %v86 = vcombine.high %v82, %v82
    %v89 = vsel %vm40, %v80, 0.0
    %v90 = vrot.slane %v89, 4
    %v91 = vadd.f32 %v89, %v90
    %v92 = vrot.slane %v91, 2
    %v93 = vadd.f32 %v91, %v92
    %v94 = vrot.slane %v93, 1
    %v95 = vadd.f32 %v93, %v94
    %v96 = vsel %vm40, %v85, 0.0
    %v97 = vrot.slane %v96, 4
    %v98 = vadd.f32 %v96, %v97
    %v99 = vrot.slane %v98, 2
    %v100 = vadd.f32 %v98, %v99
    %v101 = vrot.slane %v100, 1
    %v102 = vadd.f32 %v100, %v101
    %v103 = vsel %vm40, %v82, 0.0
    %v104 = vrot.slane %v103, 4
    %v105 = vadd.f32 %v103, %v104
    %v106 = vrot.slane %v105, 2
    %v107 = vadd.f32 %v105, %v106
    %v108 = vrot.slane %v107, 1
    %v109 = vadd.f32 %v107, %v108
    %v110 = vsel %vm40, %v86, 0.0
    %v111 = vrot.slane %v110, 4
    %v112 = vadd.f32 %v110, %v111
    %v113 = vrot.slane %v112, 2
    %v114 = vadd.f32 %v112, %v113
    %v115 = vrot.slane %v114, 1
    %v116 = vadd.f32 %v114, %v115
    %v117 = vlog2.pop %v95
    %v118 = vmul.f32 %v117, 0.6931472
    %v119 = vlog2.pop %v102
    %v120 = vmul.f32 %v119, 0.6931472
    %v121 = vlog2.pop %v109
    %v122 = vmul.f32 %v121, 0.6931472
    %v123 = vlog2.pop %v116
    %v124 = vmul.f32 %v123, 0.6931472
    %v125 = vlaneseq
    %v126 = vshrl.u32 %v125, 7
    %v127 = vlaneseq
    %v128 = vshrl.u32 %v127, 7
    %v129 = vsub.s32 0, %v128
    %v130 = vrot.slane %v31, %v129
    %v131 = vlaneseq
    %v132 = vshrl.u32 %v131, 7
    %v133 = vsub.s32 1, %v132
    %v134 = vrot.slane %v31, %v133
    %v135 = vlaneseq
    %v136 = vshrl.u32 %v135, 7
    %v137 = vsub.s32 0, %v136
    %v138 = vrot.slane %v32, %v137
    %v139 = vlaneseq
    %v140 = vshrl.u32 %v139, 7
    %v141 = vsub.s32 1, %v140
    %v142 = vrot.slane %v32, %v141
    %vm143 = vcmp.eq.s32.totalorder %v126, %v130
    %vm144 = vcmp.eq.s32.totalorder %v126, %v134
    %vm145 = vcmp.eq.s32.totalorder %v126, %v138
    %vm146 = vcmp.eq.s32.totalorder %v126, %v142
    %v149 = vcombine.high %v77, %v77
    %v150 = vcombine.high %v78, %v78
    %v153 = vsel %vm143, %v77, 0.0
    %v154 = vsel %vm144, %v149, 0.0
    %v155 = vsel %vm145, %v78, 0.0
    %v156 = vsel %vm146, %v150, 0.0
    %v157 = vsel %vm40, %v153, 0.0
    %v158 = vrot.slane %v157, 4
    %v159 = vadd.f32 %v157, %v158
    %v160 = vrot.slane %v159, 2
    %v161 = vadd.f32 %v159, %v160
    %v162 = vrot.slane %v161, 1
    %v163 = vadd.f32 %v161, %v162
    %v164 = vsel %vm40, %v154, 0.0
    %v165 = vrot.slane %v164, 4
    %v166 = vadd.f32 %v164, %v165
    %v167 = vrot.slane %v166, 2
    %v168 = vadd.f32 %v166, %v167
    %v169 = vrot.slane %v168, 1
    %v170 = vadd.f32 %v168, %v169
    %v171 = vsel %vm40, %v155, 0.0
    %v172 = vrot.slane %v171, 4
    %v173 = vadd.f32 %v171, %v172
    %v174 = vrot.slane %v173, 2
    %v175 = vadd.f32 %v173, %v174
    %v176 = vrot.slane %v175, 1
    %v177 = vadd.f32 %v175, %v176
    %v178 = vsel %vm40, %v156, 0.0
    %v179 = vrot.slane %v178, 4
    %v180 = vadd.f32 %v178, %v179
    %v181 = vrot.slane %v180, 2
    %v182 = vadd.f32 %v180, %v181
    %v183 = vrot.slane %v182, 1
    %v184 = vadd.f32 %v182, %v183
    %v185 = vsel %vm143, %v80, 0.0
    %v186 = vsel %vm144, %v85, 0.0
    %v187 = vsel %vm145, %v82, 0.0
    %v188 = vsel %vm146, %v86, 0.0
    %v189 = vsel %vm40, %v185, 0.0
    %v190 = vrot.slane %v189, 4
    %v191 = vadd.f32 %v189, %v190
    %v192 = vrot.slane %v191, 2
    %v193 = vadd.f32 %v191, %v192
    %v194 = vrot.slane %v193, 1
    %v195 = vadd.f32 %v193, %v194
    %v196 = vsel %vm40, %v186, 0.0
    %v197 = vrot.slane %v196, 4
    %v198 = vadd.f32 %v196, %v197
    %v199 = vrot.slane %v198, 2
    %v200 = vadd.f32 %v198, %v199
    %v201 = vrot.slane %v200, 1
    %v202 = vadd.f32 %v200, %v201
    %v203 = vsel %vm40, %v187, 0.0
    %v204 = vrot.slane %v203, 4
    %v205 = vadd.f32 %v203, %v204
    %v206 = vrot.slane %v205, 2
    %v207 = vadd.f32 %v205, %v206
    %v208 = vrot.slane %v207, 1
    %v209 = vadd.f32 %v207, %v208
    %v210 = vsel %vm40, %v188, 0.0
    %v211 = vrot.slane %v210, 4
    %v212 = vadd.f32 %v210, %v211
    %v213 = vrot.slane %v212, 2
    %v214 = vadd.f32 %v212, %v213
    %v215 = vrot.slane %v214, 1
    %v216 = vadd.f32 %v214, %v215
    %218 = vset.pattern.permute.xlu0 0
    %219 = vperm.xlu0 %218, %v33
    %v220 = vpop.permute.xlu0 %219
    %v222 = vsel %vm143, %v220, 0.0
    %v223 = vsel %vm144, %v220, 0.0
    %v224 = vsel %vm145, %v220, 0.0
    %v225 = vsel %vm146, %v220, 0.0
    %v226 = vsel %vm40, %v222, 0.0
    %v227 = vrot.slane %v226, 4
    %v228 = vadd.f32 %v226, %v227
    %v229 = vrot.slane %v228, 2
    %v230 = vadd.f32 %v228, %v229
    %v231 = vrot.slane %v230, 1
    %v232 = vadd.f32 %v230, %v231
    %v233 = vsel %vm40, %v223, 0.0
    %v234 = vrot.slane %v233, 4
    %v235 = vadd.f32 %v233, %v234
    %v236 = vrot.slane %v235, 2
    %v237 = vadd.f32 %v235, %v236
    %v238 = vrot.slane %v237, 1
    %v239 = vadd.f32 %v237, %v238
    %v240 = vsel %vm40, %v224, 0.0
    %v241 = vrot.slane %v240, 4
    %v242 = vadd.f32 %v240, %v241
    %v243 = vrot.slane %v242, 2
    %v244 = vadd.f32 %v242, %v243
    %v245 = vrot.slane %v244, 1
    %v246 = vadd.f32 %v244, %v245
    %v247 = vsel %vm40, %v225, 0.0
    %v248 = vrot.slane %v247, 4
    %v249 = vadd.f32 %v247, %v248
    %v250 = vrot.slane %v249, 2
    %v251 = vadd.f32 %v249, %v250
    %v252 = vrot.slane %v251, 1
    %v253 = vadd.f32 %v251, %v252
    %v254 = vsub.f32 %v163, %v118
    %v255 = vsub.f32 %v170, %v120
    %v256 = vsub.f32 %v177, %v122
    %v257 = vsub.f32 %v184, %v124
    %v258 = vrcp.pop %v95
    %v259 = vrcp.pop %v102
    %v260 = vrcp.pop %v109
    %v261 = vrcp.pop %v116
    %v262 = vmul.f32 %v195, %v258
    %v263 = vmul.f32 %v202, %v259
    %v264 = vmul.f32 %v209, %v260
    %v265 = vmul.f32 %v216, %v261
    %v266 = vmul.f32 %v254, %v232
    %v267 = vmul.f32 %v255, %v239
    %v268 = vmul.f32 %v256, %v246
    %v269 = vmul.f32 %v257, %v253
    %v270 = vsub.f32 1.0, %v262
    %v271 = vsub.f32 1.0, %v263
    %v272 = vsub.f32 1.0, %v264
    %v273 = vsub.f32 1.0, %v265
    %v274 = vmax.f32 %v270, 0.0
    %v275 = vmax.f32 %v271, 0.0
    %v276 = vmax.f32 %v272, 0.0
    %v277 = vmax.f32 %v273, 0.0
    %v278 = vmul.f32 %v274, %v274
    %v279 = vmul.f32 %v275, %v275
    %v280 = vmul.f32 %v276, %v276
    %v281 = vmul.f32 %v277, %v277
    %v282 = vmul.f32 %v278, %v266
    %v283 = vmul.f32 %v279, %v267
    %v284 = vmul.f32 %v280, %v268
    %v285 = vmul.f32 %v281, %v269
    %v286 = vsub.f32 0.0, %v282
    %v287 = vsub.f32 0.0, %v283
    %v288 = vsub.f32 0.0, %v284
    %v289 = vsub.f32 0.0, %v285
    %v290 = vadd.f32 %v286, %v288
    %v291 = vadd.f32 %v287, %v289
    %v292 = vadd.f32 %v290, %v291
    %293 = vadd.xlane.f32.xlu0 %v292
    %v294 = vpop.xlane.xlu0 %293
    %v295 = vmul.f32 %v294, 0.001953125
    %vm296 = vcmask 0
    %297 = vst.msk [vmem:[#allocation6] sm:$0x1] %vm296, %v295
    // Predicated region
    $region18: #{tpu_custom_call.1} parent=1 // pred_check
      _
    $region19: #{tpu_custom_call.1} parent=1 // pred_check_branch
      %299 = sbr.rel (0) target = $region21
    $region20: #{tpu_custom_call.1} parent=1 // pred_region
      %s301 = ssub.s32 16, 16
      %302 = vsyncadd [#allocation5], %s301
      %s304 = sshll.u32 [#allocation6], 4
      %s305 = int_to_ptr.vmem [resolvable:$true] %s304
      %307 = dma.vmem_to_hbm [thread:$0]  %s305, 16, %s3, [#allocation5]
    $region21: #{tpu_custom_call.1} parent=1 // pred_fallthru
      _
    // Predicated region
    $region22: #{tpu_custom_call.1} parent=1 // pred_check
      _
    $region23: #{tpu_custom_call.1} parent=1 // pred_check_branch
      %309 = sbr.rel (0) target = $region25
    $region24: #{tpu_custom_call.1} parent=1 // pred_region
      %310 = dma.done [#allocation5], 16
    $region25: #{tpu_custom_call.1} parent=1 // pred_fallthru
      _
    %311 = vsyncpa [#allocation4], 1
    %312 = vsyncpa [#allocation5], 1

</llo_original>
